<compile_context>
chip_gen: v7x
topology: tpu7x:2x2x1
jax: 0.10.0
libtpu: 0.0.40
codegen_flags: <defaults>
</compile_context>

<pallas_src>
import functools

import jax
import jax.numpy as jnp
from jax import lax
from jax.experimental import pallas as pl
from jax.experimental.pallas import tpu as pltpu


def _lstm_classifier_kernel(tagset, x_ref, wih_ref, whh_ref, b_ref,
                            wout_ref, bout_ref, out_ref, gx_ref):
    # x_ref:    (T, Bt, E)   bf16 time-major pre-gathered embeddings for this batch tile
    # wih_ref:  (E, 4H) bf16, whh_ref: (H, 4H) bf16, b_ref: (1, 4H) f32  (b = b_ih + b_hh)
    # wout_ref: (H, OUT_PAD) bf16, bout_ref: (1, OUT_PAD) f32   (lane-padded hidden2tag)
    # out_ref:  (Bt, OUT_PAD) f32 log-probs; only the first `tagset` lanes are valid
    # gx_ref:   VMEM scratch (T, Bt, 4H) f32 -- hoisted per-timestep input projection
    T, Bt, E = x_ref.shape
    H = whh_ref.shape[0]

    # ---- hoisted input projection: one (T*Bt, E) @ (E, 4H) matmul + bias, off the
    #      serial critical path ----
    x = x_ref[...].reshape(T * Bt, E)                              # bf16, layout-free reshape
    gx = jnp.dot(x, wih_ref[...], preferred_element_type=jnp.float32) + b_ref[...]
    gx_ref[...] = gx.reshape(T, Bt, 4 * H)                         # (T, Bt, 4H) f32

    whh = whh_ref[...]                                             # (H, 4H) bf16, loaded once

    # Precomputed lane mask: lanes [2H, 3H) are the g-gate (tanh); others use sigmoid.
    lane = lax.broadcasted_iota(jnp.int32, (Bt, 4 * H), 1)
    g_mask = jnp.logical_and(lane >= 2 * H, lane < 3 * H)

    h0 = jnp.zeros((Bt, H), jnp.float32)
    c0 = jnp.zeros((Bt, H), jnp.float32)

    def step(t, carry):
        h, c = carry
        # Serial critical path: a single (Bt, H) @ (H, 4H) bf16 matmul, f32 accumulate.
        gates = gx_ref[t] + jnp.dot(h.astype(jnp.bfloat16), whh,
                                    preferred_element_type=jnp.float32)    # (Bt, 4H) f32
        # Full-vreg transcendentals (EUP) blended by lane mask; no sliced operands into EUP.
        act = jnp.where(g_mask, jnp.tanh(gates), jax.nn.sigmoid(gates))
        i_g = act[:, 0 * H:1 * H]
        f_g = act[:, 1 * H:2 * H]
        g_g = act[:, 2 * H:3 * H]
        o_g = act[:, 3 * H:4 * H]
        c_new = f_g * c + i_g * g_g
        h_new = o_g * jnp.tanh(c_new)
        return h_new, c_new

    # T is small and static: fully unroll so iterations can overlap where deps allow.
    h_final, _ = lax.fori_loop(0, T, step, (h0, c0), unroll=True)          # (Bt, H) f32

    # ---- hidden2tag, lane-padded to OUT_PAD for a lane-dense store ----
    tag = (jnp.dot(h_final.astype(jnp.bfloat16), wout_ref[...],
                   preferred_element_type=jnp.float32) + bout_ref[...])    # (Bt, OUT_PAD)

    # Masked, numerically stable log_softmax over the first `tagset` lanes.
    out_lane = lax.broadcasted_iota(jnp.int32, tag.shape, 1)
    valid = out_lane < tagset
    neg_big = jnp.float32(-1e30)
    m = jnp.max(jnp.where(valid, tag, neg_big), axis=-1, keepdims=True)
    z = jnp.where(valid, jnp.exp(tag - m), 0.0)
    lse = m + jnp.log(jnp.sum(z, axis=-1, keepdims=True))
    out_ref[...] = tag - lse        # padded lanes hold garbage; sliced off in the wrapper


def lstm_classifier(tokens, emb, wih_t, whh_t, b, wout_t, bout, *, batch_tile=8):
    """tokens (B, T) int32; emb (V, E) f32 (row 0 = padding); wih_t (E, 4H); whh_t (H, 4H);
    b (1, 4H) = b_ih + b_hh; wout_t (H, tagset); bout (1, tagset).
    Returns (B, tagset) f32 log-probabilities."""
    B, T = tokens.shape
    E = emb.shape[1]
    H = whh_t.shape[0]
    tagset = wout_t.shape[1]

    # Pad the batch to a sublane/batch-tile multiple (pad rows use token 0 = padding_idx).
    Bt = batch_tile
    B_pad = ((B + Bt - 1) // Bt) * Bt
    tokens_p = jnp.pad(tokens, ((0, B_pad - B), (0, 0)))

    # Embedding gather in the wrapper (per perf review): the kernel only sees a time-major
    # (T, B_pad, E) activation, already cast to bf16 for the MXU.
    # TODO(synk): for long sequences / large vocab on v7x, stream x over a T grid axis
    # instead of keeping the whole (T, B, E) slab resident in VMEM.
    x = jnp.transpose(emb[tokens_p], (1, 0, 2)).astype(jnp.bfloat16)      # (T, B_pad, E)

    # bf16 MXU operands; biases stay f32.
    wih_bf = wih_t.astype(jnp.bfloat16)
    whh_bf = whh_t.astype(jnp.bfloat16)

    # Lane-pad hidden2tag so the output store is lane-dense (128 lanes).
    OUT_PAD = 128
    wout_p = jnp.zeros((H, OUT_PAD), jnp.float32).at[:, :tagset].set(wout_t).astype(jnp.bfloat16)
    bout_p = jnp.zeros((1, OUT_PAD), jnp.float32).at[:, :tagset].set(bout)

    grid = (B_pad // Bt,)
    out = pl.pallas_call(
        functools.partial(_lstm_classifier_kernel, tagset),
        out_shape=jax.ShapeDtypeStruct((B_pad, OUT_PAD), jnp.float32),
        grid_spec=pltpu.PrefetchScalarGridSpec(
            num_scalar_prefetch=0,
            grid=grid,
            in_specs=[
                pl.BlockSpec((T, Bt, E), lambda i: (0, i, 0)),        # x, tiled over batch
                pl.BlockSpec((E, 4 * H), lambda i: (0, 0)),           # W_ih^T
                pl.BlockSpec((H, 4 * H), lambda i: (0, 0)),           # W_hh^T
                pl.BlockSpec((1, 4 * H), lambda i: (0, 0)),           # bias
                pl.BlockSpec((H, OUT_PAD), lambda i: (0, 0)),         # hidden2tag W^T (padded)
                pl.BlockSpec((1, OUT_PAD), lambda i: (0, 0)),         # hidden2tag b (padded)
            ],
            out_specs=pl.BlockSpec((Bt, OUT_PAD), lambda i: (i, 0)),
            scratch_shapes=[pltpu.VMEM((T, Bt, 4 * H), jnp.float32)],
        ),
        compiler_params=pltpu.CompilerParams(
            dimension_semantics=("parallel",)),                       # batch tiles split across TCs
    )(x, wih_bf, whh_bf, b, wout_p, bout_p)

    return out[:B, :tagset]


def reference(tokens, emb, wih_t, whh_t, b, wout_t, bout):
    """Plain-JAX f32 reference with the PyTorch module's semantics."""
    x = emb[tokens]                                   # (B, T, E)
    B, T, _ = x.shape
    H = whh_t.shape[0]
    h = jnp.zeros((B, H), jnp.float32)
    c = jnp.zeros((B, H), jnp.float32)
    for t in range(T):
        gates = x[:, t] @ wih_t + h @ whh_t + b
        i = jax.nn.sigmoid(gates[:, :H])
        f = jax.nn.sigmoid(gates[:, H:2 * H])
        g = jnp.tanh(gates[:, 2 * H:3 * H])
        o = jax.nn.sigmoid(gates[:, 3 * H:])
        c = f * c + i * g
        h = o * jnp.tanh(c)
    tag_space = h @ wout_t + bout
    return jax.nn.log_softmax(tag_space, axis=-1)


if __name__ == "__main__":
    # Model hyper-params (consistent with the module: nn.Embedding(10, 6)).
    vocab_size, embedding_dim, hidden_dim, tagset_size = 10, 6, 32, 5
    B, T = 2, 8

    key = jax.random.PRNGKey(0)
    k_tok, k_emb, k_wih, k_whh, k_bih, k_bhh, k_wo, k_bo = jax.random.split(key, 8)

    # PyTorch-like init: N(0,1) embedding with zero padding row,
    # uniform(-1/sqrt(H), 1/sqrt(H)) for LSTM / Linear.
    emb = jax.random.normal(k_emb, (vocab_size, embedding_dim), jnp.float32)
    emb = emb.at[0].set(0.0)                                   # padding_idx=0
    s = 1.0 / jnp.sqrt(hidden_dim).astype(jnp.float32)
    wih_t = jax.random.uniform(k_wih, (embedding_dim, 4 * hidden_dim), jnp.float32, -s, s)
    whh_t = jax.random.uniform(k_whh, (hidden_dim, 4 * hidden_dim), jnp.float32, -s, s)
    b_ih = jax.random.uniform(k_bih, (1, 4 * hidden_dim), jnp.float32, -s, s)
    b_hh = jax.random.uniform(k_bhh, (1, 4 * hidden_dim), jnp.float32, -s, s)
    b = b_ih + b_hh
    wout_t = jax.random.uniform(k_wo, (hidden_dim, tagset_size), jnp.float32, -s, s)
    bout = jax.random.uniform(k_bo, (1, tagset_size), jnp.float32, -s, s)

    # Input sentence: (B, T) token ids in [0, vocab_size).
    tokens = jax.random.randint(k_tok, (B, T), 0, vocab_size, jnp.int32)

    out = lstm_classifier(tokens, emb, wih_t, whh_t, b, wout_t, bout)
    out = jax.block_until_ready(out)

    ref = reference(tokens, emb, wih_t, whh_t, b, wout_t, bout)
    assert out.shape == (B, tagset_size)
    # Tolerance reflects bf16 MXU operands (f32 accumulation / cell state) vs the f32 reference.
    assert jnp.allclose(out, ref, atol=2e-2, rtol=2e-2), "mismatch vs JAX reference"

    print("KERNEL_OK")
</pallas_src>

<mosaic_0001>
module attributes {stable_mosaic.version = 11 : i64} {
  func.func @_lstm_classifier_kernel(%arg0: i32, %arg1: memref<8x8x6xbf16, #tpu.memory_space<vmem>>, %arg2: memref<6x128xbf16, #tpu.memory_space<vmem>>, %arg3: memref<32x128xbf16, #tpu.memory_space<vmem>>, %arg4: memref<1x128xf32, #tpu.memory_space<vmem>>, %arg5: memref<32x128xbf16, #tpu.memory_space<vmem>>, %arg6: memref<1x128xf32, #tpu.memory_space<vmem>>, %arg7: memref<8x128xf32, #tpu.memory_space<vmem>>, %arg8: memref<8x8x128xf32, #tpu.memory_space<vmem>>) attributes {dimension_semantics = [#tpu.dimension_semantics<parallel>], iteration_bounds = array<i64: 1>, scalar_prefetch = 0 : i64, scratch_operands = 1 : i64, tpu.core_type = #tpu.core_type<tc>, window_params = [{transform_indices = @transform_0, window_bounds = array<i64: 8, 8, 6>}, {pipeline_mode = #tpu.pipeline_mode<synchronous>, transform_indices = @transform_1, window_bounds = array<i64: 6, 128>}, {pipeline_mode = #tpu.pipeline_mode<synchronous>, transform_indices = @transform_2, window_bounds = array<i64: 32, 128>}, {pipeline_mode = #tpu.pipeline_mode<synchronous>, transform_indices = @transform_3, window_bounds = array<i64: 1, 128>}, {pipeline_mode = #tpu.pipeline_mode<synchronous>, transform_indices = @transform_4, window_bounds = array<i64: 32, 128>}, {pipeline_mode = #tpu.pipeline_mode<synchronous>, transform_indices = @transform_5, window_bounds = array<i64: 1, 128>}, {transform_indices = @transform_6, window_bounds = array<i64: 8, 128>}]} {
    %c0 = arith.constant 0 : index
    %c0_0 = arith.constant 0 : index
    %c0_1 = arith.constant 0 : index
    %0 = vector.load %arg1[%c0, %c0_0, %c0_1] : memref<8x8x6xbf16, #tpu.memory_space<vmem>>, vector<8x8x6xbf16>
    %1 = vector.shape_cast %0 : vector<8x8x6xbf16> to vector<64x6xbf16>
    %c0_2 = arith.constant 0 : index
    %c0_3 = arith.constant 0 : index
    %2 = vector.load %arg2[%c0_2, %c0_3] : memref<6x128xbf16, #tpu.memory_space<vmem>>, vector<6x128xbf16>
    %cst = arith.constant dense<0.000000e+00> : vector<64x128xf32>
    %3 = tpu.matmul %1, %2, %cst {dimension_numbers = #tpu.dot_dimension_numbers<[1], [0], [0], [1], [0, 0, 1, 1], [], []>} : vector<64x6xbf16>, vector<6x128xbf16>, vector<64x128xf32> -> vector<64x128xf32>
    %c0_4 = arith.constant 0 : index
    %c0_5 = arith.constant 0 : index
    %4 = vector.load %arg4[%c0_4, %c0_5] : memref<1x128xf32, #tpu.memory_space<vmem>>, vector<1x128xf32>
    %5 = vector.broadcast %4 : vector<1x128xf32> to vector<64x128xf32>
    %6 = arith.addf %3, %5 : vector<64x128xf32>
    %7 = vector.shape_cast %6 : vector<64x128xf32> to vector<8x8x128xf32>
    %c0_6 = arith.constant 0 : index
    %c0_7 = arith.constant 0 : index
    %c0_8 = arith.constant 0 : index
    %8 = vector.load %arg8[%c0_6, %c0_7, %c0_8] : memref<8x8x128xf32, #tpu.memory_space<vmem>>, vector<8x8x128xf32>
    tpu.vector_store %arg8[%c0_6, %c0_7, %c0_8], %7 {strides = array<i32>} : memref<8x8x128xf32, #tpu.memory_space<vmem>>, vector<8x8x128xf32>,
    %c0_9 = arith.constant 0 : index
    %c0_10 = arith.constant 0 : index
    %9 = vector.load %arg3[%c0_9, %c0_10] : memref<32x128xbf16, #tpu.memory_space<vmem>>, vector<32x128xbf16>
    %10 = tpu.iota {dimensions = array<i32: 1>} : vector<8x128xi32>
    %c64_i32 = arith.constant 64 : i32
    %11 = vector.broadcast %c64_i32 : i32 to vector<8x128xi32>
    %12 = arith.cmpi sge, %10, %11 : vector<8x128xi32>
    %c96_i32 = arith.constant 96 : i32
    %13 = vector.broadcast %c96_i32 : i32 to vector<8x128xi32>
    %14 = arith.cmpi slt, %10, %13 : vector<8x128xi32>
    %15 = arith.andi %12, %14 : vector<8x128xi1>
    %cst_11 = arith.constant 0.000000e+00 : f32
    %16 = vector.broadcast %cst_11 : f32 to vector<8x32xf32>
    %cst_12 = arith.constant 0.000000e+00 : f32
    %17 = vector.broadcast %cst_12 : f32 to vector<8x32xf32>
    %c0_i32 = arith.constant 0 : i32
    %18 = arith.index_cast %c0_i32 : i32 to index
    %c0_13 = arith.constant 0 : index
    %c0_14 = arith.constant 0 : index
    %19 = vector.load %arg8[%18, %c0_13, %c0_14] : memref<8x8x128xf32, #tpu.memory_space<vmem>>, vector<1x8x128xf32>
    %20 = vector.shape_cast %19 : vector<1x8x128xf32> to vector<8x128xf32>
    %21 = arith.truncf %16 : vector<8x32xf32> to vector<8x32xbf16>
    %cst_15 = arith.constant dense<0.000000e+00> : vector<8x128xf32>
    %22 = tpu.matmul %21, %9, %cst_15 {dimension_numbers = #tpu.dot_dimension_numbers<[1], [0], [0], [1], [0, 0, 1, 1], [], []>} : vector<8x32xbf16>, vector<32x128xbf16>, vector<8x128xf32> -> vector<8x128xf32>
    %23 = arith.addf %20, %22 : vector<8x128xf32>
    %24 = math.tanh %23 : vector<8x128xf32>
    %25 = arith.negf %23 : vector<8x128xf32>
    %26 = math.exp %25 : vector<8x128xf32>
    %cst_16 = arith.constant 1.000000e+00 : f32
    %27 = vector.broadcast %cst_16 : f32 to vector<8x128xf32>
    %28 = arith.addf %27, %26 : vector<8x128xf32>
    %29 = arith.divf %27, %28 : vector<8x128xf32>
    %30 = arith.select %15, %24, %29 : vector<8x128xi1>, vector<8x128xf32>
    %31 = vector.extract_strided_slice %30 {offsets = [0, 0], sizes = [8, 32], strides = [1, 1]} : vector<8x128xf32> to vector<8x32xf32>
    %32 = vector.extract_strided_slice %30 {offsets = [0, 32], sizes = [8, 32], strides = [1, 1]} : vector<8x128xf32> to vector<8x32xf32>
    %33 = vector.extract_strided_slice %30 {offsets = [0, 64], sizes = [8, 32], strides = [1, 1]} : vector<8x128xf32> to vector<8x32xf32>
    %34 = vector.extract_strided_slice %30 {offsets = [0, 96], sizes = [8, 32], strides = [1, 1]} : vector<8x128xf32> to vector<8x32xf32>
    %35 = arith.mulf %32, %17 : vector<8x32xf32>
    %36 = arith.mulf %31, %33 : vector<8x32xf32>
    %37 = arith.addf %35, %36 : vector<8x32xf32>
    %38 = math.tanh %37 : vector<8x32xf32>
    %39 = arith.mulf %34, %38 : vector<8x32xf32>
    %c1_i32 = arith.constant 1 : i32
    %40 = arith.index_cast %c1_i32 : i32 to index
    %c0_17 = arith.constant 0 : index
    %c0_18 = arith.constant 0 : index
    %41 = vector.load %arg8[%40, %c0_17, %c0_18] : memref<8x8x128xf32, #tpu.memory_space<vmem>>, vector<1x8x128xf32>
    %42 = vector.shape_cast %41 : vector<1x8x128xf32> to vector<8x128xf32>
    %43 = arith.truncf %39 : vector<8x32xf32> to vector<8x32xbf16>
    %cst_19 = arith.constant dense<0.000000e+00> : vector<8x128xf32>
    %44 = tpu.matmul %43, %9, %cst_19 {dimension_numbers = #tpu.dot_dimension_numbers<[1], [0], [0], [1], [0, 0, 1, 1], [], []>} : vector<8x32xbf16>, vector<32x128xbf16>, vector<8x128xf32> -> vector<8x128xf32>
    %45 = arith.addf %42, %44 : vector<8x128xf32>
    %46 = math.tanh %45 : vector<8x128xf32>
    %47 = arith.negf %45 : vector<8x128xf32>
    %48 = math.exp %47 : vector<8x128xf32>
    %cst_20 = arith.constant 1.000000e+00 : f32
    %49 = vector.broadcast %cst_20 : f32 to vector<8x128xf32>
    %50 = arith.addf %49, %48 : vector<8x128xf32>
    %51 = arith.divf %49, %50 : vector<8x128xf32>
    %52 = arith.select %15, %46, %51 : vector<8x128xi1>, vector<8x128xf32>
    %53 = vector.extract_strided_slice %52 {offsets = [0, 0], sizes = [8, 32], strides = [1, 1]} : vector<8x128xf32> to vector<8x32xf32>
    %54 = vector.extract_strided_slice %52 {offsets = [0, 32], sizes = [8, 32], strides = [1, 1]} : vector<8x128xf32> to vector<8x32xf32>
    %55 = vector.extract_strided_slice %52 {offsets = [0, 64], sizes = [8, 32], strides = [1, 1]} : vector<8x128xf32> to vector<8x32xf32>
    %56 = vector.extract_strided_slice %52 {offsets = [0, 96], sizes = [8, 32], strides = [1, 1]} : vector<8x128xf32> to vector<8x32xf32>
    %57 = arith.mulf %54, %37 : vector<8x32xf32>
    %58 = arith.mulf %53, %55 : vector<8x32xf32>
    %59 = arith.addf %57, %58 : vector<8x32xf32>
    %60 = math.tanh %59 : vector<8x32xf32>
    %61 = arith.mulf %56, %60 : vector<8x32xf32>
    %c2_i32 = arith.constant 2 : i32
    %62 = arith.index_cast %c2_i32 : i32 to index
    %c0_21 = arith.constant 0 : index
    %c0_22 = arith.constant 0 : index
    %63 = vector.load %arg8[%62, %c0_21, %c0_22] : memref<8x8x128xf32, #tpu.memory_space<vmem>>, vector<1x8x128xf32>
    %64 = vector.shape_cast %63 : vector<1x8x128xf32> to vector<8x128xf32>
    %65 = arith.truncf %61 : vector<8x32xf32> to vector<8x32xbf16>
    %cst_23 = arith.constant dense<0.000000e+00> : vector<8x128xf32>
    %66 = tpu.matmul %65, %9, %cst_23 {dimension_numbers = #tpu.dot_dimension_numbers<[1], [0], [0], [1], [0, 0, 1, 1], [], []>} : vector<8x32xbf16>, vector<32x128xbf16>, vector<8x128xf32> -> vector<8x128xf32>
    %67 = arith.addf %64, %66 : vector<8x128xf32>
    %68 = math.tanh %67 : vector<8x128xf32>
    %69 = arith.negf %67 : vector<8x128xf32>
    %70 = math.exp %69 : vector<8x128xf32>
    %cst_24 = arith.constant 1.000000e+00 : f32
    %71 = vector.broadcast %cst_24 : f32 to vector<8x128xf32>
    %72 = arith.addf %71, %70 : vector<8x128xf32>
    %73 = arith.divf %71, %72 : vector<8x128xf32>
    %74 = arith.select %15, %68, %73 : vector<8x128xi1>, vector<8x128xf32>
    %75 = vector.extract_strided_slice %74 {offsets = [0, 0], sizes = [8, 32], strides = [1, 1]} : vector<8x128xf32> to vector<8x32xf32>
    %76 = vector.extract_strided_slice %74 {offsets = [0, 32], sizes = [8, 32], strides = [1, 1]} : vector<8x128xf32> to vector<8x32xf32>
    %77 = vector.extract_strided_slice %74 {offsets = [0, 64], sizes = [8, 32], strides = [1, 1]} : vector<8x128xf32> to vector<8x32xf32>
    %78 = vector.extract_strided_slice %74 {offsets = [0, 96], sizes = [8, 32], strides = [1, 1]} : vector<8x128xf32> to vector<8x32xf32>
    %79 = arith.mulf %76, %59 : vector<8x32xf32>
    %80 = arith.mulf %75, %77 : vector<8x32xf32>
    %81 = arith.addf %79, %80 : vector<8x32xf32>
    %82 = math.tanh %81 : vector<8x32xf32>
    %83 = arith.mulf %78, %82 : vector<8x32xf32>
    %c3_i32 = arith.constant 3 : i32
    %84 = arith.index_cast %c3_i32 : i32 to index
    %c0_25 = arith.constant 0 : index
    %c0_26 = arith.constant 0 : index
    %85 = vector.load %arg8[%84, %c0_25, %c0_26] : memref<8x8x128xf32, #tpu.memory_space<vmem>>, vector<1x8x128xf32>
    %86 = vector.shape_cast %85 : vector<1x8x128xf32> to vector<8x128xf32>
    %87 = arith.truncf %83 : vector<8x32xf32> to vector<8x32xbf16>
    %cst_27 = arith.constant dense<0.000000e+00> : vector<8x128xf32>
    %88 = tpu.matmul %87, %9, %cst_27 {dimension_numbers = #tpu.dot_dimension_numbers<[1], [0], [0], [1], [0, 0, 1, 1], [], []>} : vector<8x32xbf16>, vector<32x128xbf16>, vector<8x128xf32> -> vector<8x128xf32>
    %89 = arith.addf %86, %88 : vector<8x128xf32>
    %90 = math.tanh %89 : vector<8x128xf32>
    %91 = arith.negf %89 : vector<8x128xf32>
    %92 = math.exp %91 : vector<8x128xf32>
    %cst_28 = arith.constant 1.000000e+00 : f32
    %93 = vector.broadcast %cst_28 : f32 to vector<8x128xf32>
    %94 = arith.addf %93, %92 : vector<8x128xf32>
    %95 = arith.divf %93, %94 : vector<8x128xf32>
    %96 = arith.select %15, %90, %95 : vector<8x128xi1>, vector<8x128xf32>
    %97 = vector.extract_strided_slice %96 {offsets = [0, 0], sizes = [8, 32], strides = [1, 1]} : vector<8x128xf32> to vector<8x32xf32>
    %98 = vector.extract_strided_slice %96 {offsets = [0, 32], sizes = [8, 32], strides = [1, 1]} : vector<8x128xf32> to vector<8x32xf32>
    %99 = vector.extract_strided_slice %96 {offsets = [0, 64], sizes = [8, 32], strides = [1, 1]} : vector<8x128xf32> to vector<8x32xf32>
    %100 = vector.extract_strided_slice %96 {offsets = [0, 96], sizes = [8, 32], strides = [1, 1]} : vector<8x128xf32> to vector<8x32xf32>
    %101 = arith.mulf %98, %81 : vector<8x32xf32>
    %102 = arith.mulf %97, %99 : vector<8x32xf32>
    %103 = arith.addf %101, %102 : vector<8x32xf32>
    %104 = math.tanh %103 : vector<8x32xf32>
    %105 = arith.mulf %100, %104 : vector<8x32xf32>
    %c4_i32 = arith.constant 4 : i32
    %106 = arith.index_cast %c4_i32 : i32 to index
    %c0_29 = arith.constant 0 : index
    %c0_30 = arith.constant 0 : index
    %107 = vector.load %arg8[%106, %c0_29, %c0_30] : memref<8x8x128xf32, #tpu.memory_space<vmem>>, vector<1x8x128xf32>
    %108 = vector.shape_cast %107 : vector<1x8x128xf32> to vector<8x128xf32>
    %109 = arith.truncf %105 : vector<8x32xf32> to vector<8x32xbf16>
    %cst_31 = arith.constant dense<0.000000e+00> : vector<8x128xf32>
    %110 = tpu.matmul %109, %9, %cst_31 {dimension_numbers = #tpu.dot_dimension_numbers<[1], [0], [0], [1], [0, 0, 1, 1], [], []>} : vector<8x32xbf16>, vector<32x128xbf16>, vector<8x128xf32> -> vector<8x128xf32>
    %111 = arith.addf %108, %110 : vector<8x128xf32>
    %112 = math.tanh %111 : vector<8x128xf32>
    %113 = arith.negf %111 : vector<8x128xf32>
    %114 = math.exp %113 : vector<8x128xf32>
    %cst_32 = arith.constant 1.000000e+00 : f32
    %115 = vector.broadcast %cst_32 : f32 to vector<8x128xf32>
    %116 = arith.addf %115, %114 : vector<8x128xf32>
    %117 = arith.divf %115, %116 : vector<8x128xf32>
    %118 = arith.select %15, %112, %117 : vector<8x128xi1>, vector<8x128xf32>
    %119 = vector.extract_strided_slice %118 {offsets = [0, 0], sizes = [8, 32], strides = [1, 1]} : vector<8x128xf32> to vector<8x32xf32>
    %120 = vector.extract_strided_slice %118 {offsets = [0, 32], sizes = [8, 32], strides = [1, 1]} : vector<8x128xf32> to vector<8x32xf32>
    %121 = vector.extract_strided_slice %118 {offsets = [0, 64], sizes = [8, 32], strides = [1, 1]} : vector<8x128xf32> to vector<8x32xf32>
    %122 = vector.extract_strided_slice %118 {offsets = [0, 96], sizes = [8, 32], strides = [1, 1]} : vector<8x128xf32> to vector<8x32xf32>
    %123 = arith.mulf %120, %103 : vector<8x32xf32>
    %124 = arith.mulf %119, %121 : vector<8x32xf32>
    %125 = arith.addf %123, %124 : vector<8x32xf32>
    %126 = math.tanh %125 : vector<8x32xf32>
    %127 = arith.mulf %122, %126 : vector<8x32xf32>
    %c5_i32 = arith.constant 5 : i32
    %128 = arith.index_cast %c5_i32 : i32 to index
    %c0_33 = arith.constant 0 : index
    %c0_34 = arith.constant 0 : index
    %129 = vector.load %arg8[%128, %c0_33, %c0_34] : memref<8x8x128xf32, #tpu.memory_space<vmem>>, vector<1x8x128xf32>
    %130 = vector.shape_cast %129 : vector<1x8x128xf32> to vector<8x128xf32>
    %131 = arith.truncf %127 : vector<8x32xf32> to vector<8x32xbf16>
    %cst_35 = arith.constant dense<0.000000e+00> : vector<8x128xf32>
    %132 = tpu.matmul %131, %9, %cst_35 {dimension_numbers = #tpu.dot_dimension_numbers<[1], [0], [0], [1], [0, 0, 1, 1], [], []>} : vector<8x32xbf16>, vector<32x128xbf16>, vector<8x128xf32> -> vector<8x128xf32>
    %133 = arith.addf %130, %132 : vector<8x128xf32>
    %134 = math.tanh %133 : vector<8x128xf32>
    %135 = arith.negf %133 : vector<8x128xf32>
    %136 = math.exp %135 : vector<8x128xf32>
    %cst_36 = arith.constant 1.000000e+00 : f32
    %137 = vector.broadcast %cst_36 : f32 to vector<8x128xf32>
    %138 = arith.addf %137, %136 : vector<8x128xf32>
    %139 = arith.divf %137, %138 : vector<8x128xf32>
    %140 = arith.select %15, %134, %139 : vector<8x128xi1>, vector<8x128xf32>
    %141 = vector.extract_strided_slice %140 {offsets = [0, 0], sizes = [8, 32], strides = [1, 1]} : vector<8x128xf32> to vector<8x32xf32>
    %142 = vector.extract_strided_slice %140 {offsets = [0, 32], sizes = [8, 32], strides = [1, 1]} : vector<8x128xf32> to vector<8x32xf32>
    %143 = vector.extract_strided_slice %140 {offsets = [0, 64], sizes = [8, 32], strides = [1, 1]} : vector<8x128xf32> to vector<8x32xf32>
    %144 = vector.extract_strided_slice %140 {offsets = [0, 96], sizes = [8, 32], strides = [1, 1]} : vector<8x128xf32> to vector<8x32xf32>
    %145 = arith.mulf %142, %125 : vector<8x32xf32>
    %146 = arith.mulf %141, %143 : vector<8x32xf32>
    %147 = arith.addf %145, %146 : vector<8x32xf32>
    %148 = math.tanh %147 : vector<8x32xf32>
    %149 = arith.mulf %144, %148 : vector<8x32xf32>
    %c6_i32 = arith.constant 6 : i32
    %150 = arith.index_cast %c6_i32 : i32 to index
    %c0_37 = arith.constant 0 : index
    %c0_38 = arith.constant 0 : index
    %151 = vector.load %arg8[%150, %c0_37, %c0_38] : memref<8x8x128xf32, #tpu.memory_space<vmem>>, vector<1x8x128xf32>
    %152 = vector.shape_cast %151 : vector<1x8x128xf32> to vector<8x128xf32>
    %153 = arith.truncf %149 : vector<8x32xf32> to vector<8x32xbf16>
    %cst_39 = arith.constant dense<0.000000e+00> : vector<8x128xf32>
    %154 = tpu.matmul %153, %9, %cst_39 {dimension_numbers = #tpu.dot_dimension_numbers<[1], [0], [0], [1], [0, 0, 1, 1], [], []>} : vector<8x32xbf16>, vector<32x128xbf16>, vector<8x128xf32> -> vector<8x128xf32>
    %155 = arith.addf %152, %154 : vector<8x128xf32>
    %156 = math.tanh %155 : vector<8x128xf32>
    %157 = arith.negf %155 : vector<8x128xf32>
    %158 = math.exp %157 : vector<8x128xf32>
    %cst_40 = arith.constant 1.000000e+00 : f32
    %159 = vector.broadcast %cst_40 : f32 to vector<8x128xf32>
    %160 = arith.addf %159, %158 : vector<8x128xf32>
    %161 = arith.divf %159, %160 : vector<8x128xf32>
    %162 = arith.select %15, %156, %161 : vector<8x128xi1>, vector<8x128xf32>
    %163 = vector.extract_strided_slice %162 {offsets = [0, 0], sizes = [8, 32], strides = [1, 1]} : vector<8x128xf32> to vector<8x32xf32>
    %164 = vector.extract_strided_slice %162 {offsets = [0, 32], sizes = [8, 32], strides = [1, 1]} : vector<8x128xf32> to vector<8x32xf32>
    %165 = vector.extract_strided_slice %162 {offsets = [0, 64], sizes = [8, 32], strides = [1, 1]} : vector<8x128xf32> to vector<8x32xf32>
    %166 = vector.extract_strided_slice %162 {offsets = [0, 96], sizes = [8, 32], strides = [1, 1]} : vector<8x128xf32> to vector<8x32xf32>
    %167 = arith.mulf %164, %147 : vector<8x32xf32>
    %168 = arith.mulf %163, %165 : vector<8x32xf32>
    %169 = arith.addf %167, %168 : vector<8x32xf32>
    %170 = math.tanh %169 : vector<8x32xf32>
    %171 = arith.mulf %166, %170 : vector<8x32xf32>
    %c7_i32 = arith.constant 7 : i32
    %172 = arith.index_cast %c7_i32 : i32 to index
    %c0_41 = arith.constant 0 : index
    %c0_42 = arith.constant 0 : index
    %173 = vector.load %arg8[%172, %c0_41, %c0_42] : memref<8x8x128xf32, #tpu.memory_space<vmem>>, vector<1x8x128xf32>
    %174 = vector.shape_cast %173 : vector<1x8x128xf32> to vector<8x128xf32>
    %175 = arith.truncf %171 : vector<8x32xf32> to vector<8x32xbf16>
    %cst_43 = arith.constant dense<0.000000e+00> : vector<8x128xf32>
    %176 = tpu.matmul %175, %9, %cst_43 {dimension_numbers = #tpu.dot_dimension_numbers<[1], [0], [0], [1], [0, 0, 1, 1], [], []>} : vector<8x32xbf16>, vector<32x128xbf16>, vector<8x128xf32> -> vector<8x128xf32>
    %177 = arith.addf %174, %176 : vector<8x128xf32>
    %178 = math.tanh %177 : vector<8x128xf32>
    %179 = arith.negf %177 : vector<8x128xf32>
    %180 = math.exp %179 : vector<8x128xf32>
    %cst_44 = arith.constant 1.000000e+00 : f32
    %181 = vector.broadcast %cst_44 : f32 to vector<8x128xf32>
    %182 = arith.addf %181, %180 : vector<8x128xf32>
    %183 = arith.divf %181, %182 : vector<8x128xf32>
    %184 = arith.select %15, %178, %183 : vector<8x128xi1>, vector<8x128xf32>
    %185 = vector.extract_strided_slice %184 {offsets = [0, 0], sizes = [8, 32], strides = [1, 1]} : vector<8x128xf32> to vector<8x32xf32>
    %186 = vector.extract_strided_slice %184 {offsets = [0, 32], sizes = [8, 32], strides = [1, 1]} : vector<8x128xf32> to vector<8x32xf32>
    %187 = vector.extract_strided_slice %184 {offsets = [0, 64], sizes = [8, 32], strides = [1, 1]} : vector<8x128xf32> to vector<8x32xf32>
    %188 = vector.extract_strided_slice %184 {offsets = [0, 96], sizes = [8, 32], strides = [1, 1]} : vector<8x128xf32> to vector<8x32xf32>
    %189 = arith.mulf %186, %169 : vector<8x32xf32>
    %190 = arith.mulf %185, %187 : vector<8x32xf32>
    %191 = arith.addf %189, %190 : vector<8x32xf32>
    %192 = math.tanh %191 : vector<8x32xf32>
    %193 = arith.mulf %188, %192 : vector<8x32xf32>
    %c8_i32 = arith.constant 8 : i32
    %194 = arith.truncf %193 : vector<8x32xf32> to vector<8x32xbf16>
    %c0_45 = arith.constant 0 : index
    %c0_46 = arith.constant 0 : index
    %195 = vector.load %arg5[%c0_45, %c0_46] : memref<32x128xbf16, #tpu.memory_space<vmem>>, vector<32x128xbf16>
    %cst_47 = arith.constant dense<0.000000e+00> : vector<8x128xf32>
    %196 = tpu.matmul %194, %195, %cst_47 {dimension_numbers = #tpu.dot_dimension_numbers<[1], [0], [0], [1], [0, 0, 1, 1], [], []>} : vector<8x32xbf16>, vector<32x128xbf16>, vector<8x128xf32> -> vector<8x128xf32>
    %c0_48 = arith.constant 0 : index
    %c0_49 = arith.constant 0 : index
    %197 = vector.load %arg6[%c0_48, %c0_49] : memref<1x128xf32, #tpu.memory_space<vmem>>, vector<1x128xf32>
    %198 = vector.broadcast %197 : vector<1x128xf32> to vector<8x128xf32>
    %199 = arith.addf %196, %198 : vector<8x128xf32>
    %200 = tpu.iota {dimensions = array<i32: 1>} : vector<8x128xi32>
    %c5_i32_50 = arith.constant 5 : i32
    %201 = vector.broadcast %c5_i32_50 : i32 to vector<8x128xi32>
    %202 = arith.cmpi slt, %200, %201 : vector<8x128xi32>
    %cst_51 = arith.constant -1.000000e+30 : f32
    %203 = vector.broadcast %cst_51 : f32 to vector<8x128xf32>
    %204 = arith.select %202, %199, %203 : vector<8x128xi1>, vector<8x128xf32>
    %cst_52 = arith.constant dense<0xFF800000> : vector<8xf32>
    %205 = vector.multi_reduction <maximumf>, %204, %cst_52 [1] : vector<8x128xf32> to vector<8xf32>
    %206 = vector.shape_cast %205 : vector<8xf32> to vector<8x1xf32>
    %207 = vector.broadcast %206 : vector<8x1xf32> to vector<8x128xf32>
    %208 = arith.subf %199, %207 : vector<8x128xf32>
    %209 = math.exp %208 : vector<8x128xf32>
    %cst_53 = arith.constant 0.000000e+00 : f32
    %210 = vector.broadcast %cst_53 : f32 to vector<8x128xf32>
    %211 = arith.select %202, %209, %210 : vector<8x128xi1>, vector<8x128xf32>
    %cst_54 = arith.constant dense<0.000000e+00> : vector<8xf32>
    %212 = vector.multi_reduction <add>, %211, %cst_54 [1] : vector<8x128xf32> to vector<8xf32>
    %213 = vector.shape_cast %212 : vector<8xf32> to vector<8x1xf32>
    %214 = math.log %213 : vector<8x1xf32>
    %215 = arith.addf %206, %214 : vector<8x1xf32>
    %216 = vector.broadcast %215 : vector<8x1xf32> to vector<8x128xf32>
    %217 = arith.subf %199, %216 : vector<8x128xf32>
    %c0_55 = arith.constant 0 : index
    %c0_56 = arith.constant 0 : index
    %218 = vector.load %arg7[%c0_55, %c0_56] : memref<8x128xf32, #tpu.memory_space<vmem>>, vector<8x128xf32>
    tpu.vector_store %arg7[%c0_55, %c0_56], %217 {strides = array<i32>} : memref<8x128xf32, #tpu.memory_space<vmem>>, vector<8x128xf32>,
    return
  }
  func.func @transform_0(%arg0: i32) -> (i32, i32, i32) {
    %c0_i32 = arith.constant 0 : i32
    %c0_i32_0 = arith.constant 0 : i32
    %c0_i32_1 = arith.constant 0 : i32
    return %c0_i32, %arg0, %c0_i32_0 : i32, i32, i32
  }
  func.func @transform_1(%arg0: i32) -> (i32, i32) {
    %c0_i32 = arith.constant 0 : i32
    %c0_i32_0 = arith.constant 0 : i32
    %c0_i32_1 = arith.constant 0 : i32
    return %c0_i32, %c0_i32_0 : i32, i32
  }
  func.func @transform_2(%arg0: i32) -> (i32, i32) {
    %c0_i32 = arith.constant 0 : i32
    %c0_i32_0 = arith.constant 0 : i32
    %c0_i32_1 = arith.constant 0 : i32
    return %c0_i32, %c0_i32_0 : i32, i32
  }
  func.func @transform_3(%arg0: i32) -> (i32, i32) {
    %c0_i32 = arith.constant 0 : i32
    %c0_i32_0 = arith.constant 0 : i32
    %c0_i32_1 = arith.constant 0 : i32
    return %c0_i32, %c0_i32_0 : i32, i32
  }
  func.func @transform_4(%arg0: i32) -> (i32, i32) {
    %c0_i32 = arith.constant 0 : i32
    %c0_i32_0 = arith.constant 0 : i32
    %c0_i32_1 = arith.constant 0 : i32
    return %c0_i32, %c0_i32_0 : i32, i32
  }
  func.func @transform_5(%arg0: i32) -> (i32, i32) {
    %c0_i32 = arith.constant 0 : i32
    %c0_i32_0 = arith.constant 0 : i32
    %c0_i32_1 = arith.constant 0 : i32
    return %c0_i32, %c0_i32_0 : i32, i32
  }
  func.func @transform_6(%arg0: i32) -> (i32, i32) {
    %c0_i32 = arith.constant 0 : i32
    %c0_i32_0 = arith.constant 0 : i32
    return %arg0, %c0_i32 : i32, i32
  }
}

</mosaic_0001>

<llo_original>
// kernel: tpu_custom_call.1
$region0: #{tpu_custom_call.1}
  #allocation0 [shape = 'u32[]', space=smem, size = 0x4, offset = 0x4, fixed_abs, tag = 'smem constant byte address 0x4 - core index']
  #allocation1 [shape = 'u32[144,128]{1,0:T(1,128)}', space=vmem, size = 0x12000, scoped, tag = 'internal scratch']
  #allocation2 [shape = 'f32[8,8,128]{2,1,0:T(8,128)}', space=vmem, size = 0x8000, scoped, tag = 'scratch operand']
  %s0 = inlined_call_operand.vmem [shape: bf16[8,8,6], index: 0, kind: input, shape index: {}]
  %s1 = inlined_call_operand.vmem [shape: bf16[6,128], index: 1, kind: input, shape index: {}]
  %s2 = inlined_call_operand.vmem [shape: bf16[32,128], index: 2, kind: input, shape index: {}]
  %s3 = inlined_call_operand.vmem [shape: f32[1,128], index: 3, kind: input, shape index: {}]
  %s4 = inlined_call_operand.vmem [shape: bf16[32,128], index: 4, kind: input, shape index: {}]
  %s5 = inlined_call_operand.vmem [shape: f32[1,128], index: 5, kind: input, shape index: {}]
  %s6 = inlined_call_operand.hbm [shape: f32[8,128], index: 6, kind: output, shape index: {}]
  %s7 = sld [smem:[#allocation0]]
  $region34: #{tpu_custom_call.1} parent=0
    _
  %s9 = ssub.s32 1, %s7
  %s10 = scalar_select 0, %s9, %s7
  $region1: #{tpu_custom_call.1} parent=0
    #allocation3 [shape = 'u8[4096]{0}', space=vmem, size = 0x1000, scoped, tag = 'output window, operand 0, single buffered']
    #allocation4 [shape = 's32[1]{0}', space=sflag, size = 0x4, scoped, tag = 'scoped memory for tpu_custom_call.1']
    %11 = vsyncpa [#allocation4], 0
    // Predicated region
    $region2: #{tpu_custom_call.1} parent=1 // pred_check
      _
    $region3: #{tpu_custom_call.1} parent=1 // pred_check_branch
      %13 = sbr.rel (0) target = $region5
    $region4: #{tpu_custom_call.1} parent=1 // pred_region
      _
    $region5: #{tpu_custom_call.1} parent=1 // pred_fallthru
      _
    // Predicated region
    $region6: #{tpu_custom_call.1} parent=1 // pred_check
      _
    $region7: #{tpu_custom_call.1} parent=1 // pred_check_branch
      %15 = sbr.rel (0) target = $region9
    $region8: #{tpu_custom_call.1} parent=1 // pred_region
      _
    $region9: #{tpu_custom_call.1} parent=1 // pred_fallthru
      _
    // Predicated region
    $region10: #{tpu_custom_call.1} parent=1 // pred_check
      _
    $region11: #{tpu_custom_call.1} parent=1 // pred_check_branch
      %17 = sbr.rel (0) target = $region13
    $region12: #{tpu_custom_call.1} parent=1 // pred_region
      _
    $region13: #{tpu_custom_call.1} parent=1 // pred_fallthru
      _
    // Predicated region
    $region14: #{tpu_custom_call.1} parent=1 // pred_check
      _
    $region15: #{tpu_custom_call.1} parent=1 // pred_check_branch
      %19 = sbr.rel (0) target = $region17
    $region16: #{tpu_custom_call.1} parent=1 // pred_region
      _
    $region17: #{tpu_custom_call.1} parent=1 // pred_fallthru
      _
    // Predicated region
    $region18: #{tpu_custom_call.1} parent=1 // pred_check
      _
    $region19: #{tpu_custom_call.1} parent=1 // pred_check_branch
      %21 = sbr.rel (0) target = $region21
    $region20: #{tpu_custom_call.1} parent=1 // pred_region
      _
    $region21: #{tpu_custom_call.1} parent=1 // pred_fallthru
      _
    // Predicated region
    $region22: #{tpu_custom_call.1} parent=1 // pred_check
      _
    $region23: #{tpu_custom_call.1} parent=1 // pred_check_branch
      %23 = sbr.rel (0) target = $region25
    $region24: #{tpu_custom_call.1} parent=1 // pred_region
      _
    $region25: #{tpu_custom_call.1} parent=1 // pred_fallthru
      _
    %v25 = vld [vmem:[%s0] sm:$0xf]
    %v26 = vld [vmem:[%s0 + $0x4] sm:$0xf]
    %v27 = vld [vmem:[%s0 + $0x8] sm:$0xf]
    %v28 = vld [vmem:[%s0 + $0xc] sm:$0xf]
    %v29 = vld [vmem:[%s0 + $0x10] sm:$0xf]
    %v30 = vld [vmem:[%s0 + $0x14] sm:$0xf]
    %v31 = vld [vmem:[%s0 + $0x18] sm:$0xf]
    %v32 = vld [vmem:[%s0 + $0x1c] sm:$0xf]
    %v33 = vld [vmem:[%s1] sm:$0x7]
    %v34 = vld [vmem:[%s3] sm:$0x1]
    %v36 = vlaneseq
    %v37 = vshrl.u32 %v36, 7
    %v38 = vsub.s32 0, %v37
    %v39 = vrot.slane %v34, %v38
    %v49 = vunpack.c.l.b16 %v25
    %v50 = vunpack.c.l.b16 %v26
    %v51 = vunpack.c.l.b16 %v27
    %v52 = vunpack.c.l.b16 %v28
    %v53 = vunpack.c.l.b16 %v29
    %v54 = vunpack.c.l.b16 %v30
    %v55 = vunpack.c.l.b16 %v31
    %v56 = vunpack.c.l.b16 %v32
    %v57 = vpack.c.b16 %v50, %v49
    %v58 = vpack.c.b16 %v52, %v51
    %v59 = vpack.c.b16 %v54, %v53
    %v60 = vpack.c.b16 %v56, %v55
    %vm61 = vcmask 48128
    %v63 = vsel %vm61, %v57, 0
    %v66 = vsel %vm61, %v58, 0
    %v69 = vsel %vm61, %v59, 0
    %v72 = vsel %vm61, %v60, 0
    %vm74 = vcmask 1042432
    %v76 = vsel %vm74, %v33, 0
    %78 = vmatprep.subr.bf16.mxu0 0
    %79 = vmatpush1.bf16.msra.mxu0 %v76
    %80 = vmatprep.subr.bf16.mxu0 0
    %81 = vmatpush1.bf16.msra.mxu0 0
    %82 = vmatprep.subr.bf16.mxu0 0
    %83 = vmatpush1.bf16.msra.mxu0 0
    %84 = vmatprep.subr.bf16.mxu0 0
    %85 = vmatpush1.bf16.msra.mxu0 0
    %86 = vmatprep.subr.bf16.mxu0 0
    %87 = vmatpush1.bf16.msra.mxu0 0
    %88 = vmatprep.subr.bf16.mxu0 0
    %89 = vmatpush1.bf16.msra.mxu0 0
    %90 = vmatprep.subr.bf16.mxu0 0
    %91 = vmatpush1.bf16.msra.mxu0 0
    %92 = vmatprep.subr.bf16.mxu0 0
    %93 = vmatpush1.bf16.msra.mxu0 0
    %94 = vmatprep.subr.bf16.mxu0 0
    %95 = vmatpush1.bf16.msra.mxu0 0
    %96 = vmatprep.subr.bf16.mxu0 0
    %97 = vmatpush1.bf16.msra.mxu0 0
    %98 = vmatprep.subr.bf16.mxu0 0
    %99 = vmatpush1.bf16.msra.mxu0 0
    %100 = vmatprep.subr.bf16.mxu0 0
    %101 = vmatpush1.bf16.msra.mxu0 0
    %102 = vmatprep.subr.bf16.mxu0 0
    %103 = vmatpush1.bf16.msra.mxu0 0
    %104 = vmatprep.subr.bf16.mxu0 0
    %105 = vmatpush1.bf16.msra.mxu0 0
    %106 = vmatprep.subr.bf16.mxu0 0
    %107 = vmatpush1.bf16.msra.mxu0 0
    %108 = vmatprep.subr.bf16.mxu0 0
    %109 = vmatpush1.bf16.msra.mxu0 0
    %110 = vmatprep.mubr.bf16.mxu0 0
    %111 = vmatmul.mubr.bf16.gmra.mrb[0].mxu0 %v63
    %v112 = vpop.f32.mrb[0].mxu0
    %v113 = vadd.f32 %v39, %v112
    %v114 = vpop.f32.mrb[0].mxu0
    %v115 = vpop.f32.mrb[0].mxu0
    %v116 = vadd.f32 %v39, %v115
    %v117 = vpop.f32.mrb[0].mxu0
    %118 = vmatprep.mubr.bf16.mxu0 0
    %119 = vmatmul.mubr.bf16.gmra.mrb[0].mxu0 %v66
    %v120 = vpop.f32.mrb[0].mxu0
    %v121 = vadd.f32 %v39, %v120
    %v122 = vpop.f32.mrb[0].mxu0
    %v123 = vpop.f32.mrb[0].mxu0
    %v124 = vadd.f32 %v39, %v123
    %v125 = vpop.f32.mrb[0].mxu0
    %126 = vmatprep.mubr.bf16.mxu0 0
    %127 = vmatmul.mubr.bf16.gmra.mrb[0].mxu0 %v69
    %v128 = vpop.f32.mrb[0].mxu0
    %v129 = vadd.f32 %v39, %v128
    %v130 = vpop.f32.mrb[0].mxu0
    %v131 = vpop.f32.mrb[0].mxu0
    %v132 = vadd.f32 %v39, %v131
    %v133 = vpop.f32.mrb[0].mxu0
    %134 = vmatprep.mubr.bf16.mxu0 0
    %135 = vmatmul.mubr.bf16.gmra.mrb[0].mxu0 %v72
    %v136 = vpop.f32.mrb[0].mxu0
    %v137 = vadd.f32 %v39, %v136
    %v138 = vpop.f32.mrb[0].mxu0
    %v139 = vpop.f32.mrb[0].mxu0
    %v140 = vadd.f32 %v39, %v139
    %v141 = vpop.f32.mrb[0].mxu0
    %142 = vdwg.mxu0
    %143 = vst [vmem:[#allocation2] sm:$0xff] %v113
    %144 = vst [vmem:[#allocation2 + $0x8] sm:$0xff] %v116
    %145 = vst [vmem:[#allocation2 + $0x10] sm:$0xff] %v121
    %146 = vst [vmem:[#allocation2 + $0x18] sm:$0xff] %v124
    %147 = vst [vmem:[#allocation2 + $0x20] sm:$0xff] %v129
    %148 = vst [vmem:[#allocation2 + $0x28] sm:$0xff] %v132
    %149 = vst [vmem:[#allocation2 + $0x30] sm:$0xff] %v137
    %150 = vst [vmem:[#allocation2 + $0x38] sm:$0xff] %v140
    %v151 = vld [vmem:[%s2] sm:$0xf]
    %v152 = vld [vmem:[%s2 + $0x4] sm:$0xf]
    %v153 = vld [vmem:[%s2 + $0x8] sm:$0xf]
    %v154 = vld [vmem:[%s2 + $0xc] sm:$0xf]
    %v155 = vlaneseq
    %v156 = vand.u32 %v155, 127
    %vm157 = vcmp.ge.s32.totalorder %v156, 64
    %vm158 = vcmp.lt.s32.totalorder %v156, 96
    %vm159 = vmand %vm157, %vm158
    %v160 = vld [vmem:[#allocation2] sm:$0xff]
    %v165 = vunpack.c.l.b16 %v151
    %v166 = vunpack.c.l.b16 %v152
    %v167 = vunpack.c.l.b16 %v153
    %v168 = vunpack.c.l.b16 %v154
    %v169 = vpack.c.b16 %v166, %v165
    %v170 = vpack.c.b16 %v168, %v167
    %vm173 = vcmask 261120
    %v175 = vsel %vm173, 0, 0
    %177 = vmatprep.subr.bf16.mxu0 0
    %178 = vmatpush1.bf16.msra.mxu0 %v169
    %179 = vmatprep.subr.bf16.mxu0 0
    %180 = vmatpush1.bf16.msra.mxu0 %v170
    %181 = vmatprep.subr.bf16.mxu0 0
    %182 = vmatpush1.bf16.msra.mxu0 0
    %183 = vmatprep.subr.bf16.mxu0 0
    %184 = vmatpush1.bf16.msra.mxu0 0
    %185 = vmatprep.subr.bf16.mxu0 0
    %186 = vmatpush1.bf16.msra.mxu0 0
    %187 = vmatprep.subr.bf16.mxu0 0
    %188 = vmatpush1.bf16.msra.mxu0 0
    %189 = vmatprep.subr.bf16.mxu0 0
    %190 = vmatpush1.bf16.msra.mxu0 0
    %191 = vmatprep.subr.bf16.mxu0 0
    %192 = vmatpush1.bf16.msra.mxu0 0
    %193 = vmatprep.subr.bf16.mxu0 0
    %194 = vmatpush1.bf16.msra.mxu0 0
    %195 = vmatprep.subr.bf16.mxu0 0
    %196 = vmatpush1.bf16.msra.mxu0 0
    %197 = vmatprep.subr.bf16.mxu0 0
    %198 = vmatpush1.bf16.msra.mxu0 0
    %199 = vmatprep.subr.bf16.mxu0 0
    %200 = vmatpush1.bf16.msra.mxu0 0
    %201 = vmatprep.subr.bf16.mxu0 0
    %202 = vmatpush1.bf16.msra.mxu0 0
    %203 = vmatprep.subr.bf16.mxu0 0
    %204 = vmatpush1.bf16.msra.mxu0 0
    %205 = vmatprep.subr.bf16.mxu0 0
    %206 = vmatpush1.bf16.msra.mxu0 0
    %207 = vmatprep.subr.bf16.mxu0 0
    %208 = vmatpush1.bf16.msra.mxu0 0
    %209 = vmatprep.mubr.bf16.mxu0 0
    %210 = vmatmul.mubr.bf16.gmra.mrb[0].mxu0 %v175
    %v211 = vpop.f32.mrb[0].mxu0
    %v212 = vadd.f32 0.0, %v211
    %v213 = vpop.f32.mrb[0].mxu0
    %v214 = vpop.f32.mrb[0].mxu0
    %v215 = vpop.f32.mrb[0].mxu0
    %216 = vdwg.mxu0
    %v217 = vadd.f32 %v160, %v212
    %v218 = vtanh.pop %v217
    %v219 = vxor.u32 %v217, 2147483648
    %v220 = vmul.f32 %v219, 1.442695
    %v221 = vpow.pop %v220
    %v222 = vadd.f32 %v221, 1.0
    %v223 = vrcp.pop %v222
    %v224 = vmul.f32 1.0, %v223
    %v225 = vsel %vm159, %v218, %v224
    %v226 = vmul.f32 %v225, 0.0
    %228 = vrot.lane.b32.xlu0 %v225, 64
    %v229 = vpop.permute.xlu0 %228
    %v231 = vmul.f32 %v225, %v229
    %233 = vrot.lane.b32.xlu0 %v231, 32
    %v234 = vpop.permute.xlu0 %233
    %v236 = vadd.f32 %v226, %v234
    %v237 = vtanh.pop %v236
    %239 = vrot.lane.b32.xlu0 %v237, 64
    %v240 = vpop.permute.xlu0 %239
    %v242 = vmul.f32 %v225, %v240
    %s243 = scalar_lea.vmem [#allocation2], 8
    %v244 = vld [vmem:[%s243] sm:$0xff]
    %v245 = vpack.c.bf16 %v242, %v242
    %247 = vrot.lane.b32.xlu0 %v245, 32
    %v248 = vpop.permute.xlu0 %247
    %v250 = vsel %vm173, %v248, 0
    %252 = vmatprep.subr.bf16.mxu0 0
    %253 = vmatpush1.bf16.msra.mxu0 %v169
    %254 = vmatprep.subr.bf16.mxu0 0
    %255 = vmatpush1.bf16.msra.mxu0 %v170
    %256 = vmatprep.subr.bf16.mxu0 0
    %257 = vmatpush1.bf16.msra.mxu0 0
    %258 = vmatprep.subr.bf16.mxu0 0
    %259 = vmatpush1.bf16.msra.mxu0 0
    %260 = vmatprep.subr.bf16.mxu0 0
    %261 = vmatpush1.bf16.msra.mxu0 0
    %262 = vmatprep.subr.bf16.mxu0 0
    %263 = vmatpush1.bf16.msra.mxu0 0
    %264 = vmatprep.subr.bf16.mxu0 0
    %265 = vmatpush1.bf16.msra.mxu0 0
    %266 = vmatprep.subr.bf16.mxu0 0
    %267 = vmatpush1.bf16.msra.mxu0 0
    %268 = vmatprep.subr.bf16.mxu0 0
    %269 = vmatpush1.bf16.msra.mxu0 0
    %270 = vmatprep.subr.bf16.mxu0 0
    %271 = vmatpush1.bf16.msra.mxu0 0
    %272 = vmatprep.subr.bf16.mxu0 0
    %273 = vmatpush1.bf16.msra.mxu0 0
    %274 = vmatprep.subr.bf16.mxu0 0
    %275 = vmatpush1.bf16.msra.mxu0 0
    %276 = vmatprep.subr.bf16.mxu0 0
    %277 = vmatpush1.bf16.msra.mxu0 0
    %278 = vmatprep.subr.bf16.mxu0 0
    %279 = vmatpush1.bf16.msra.mxu0 0
    %280 = vmatprep.subr.bf16.mxu0 0
    %281 = vmatpush1.bf16.msra.mxu0 0
    %282 = vmatprep.subr.bf16.mxu0 0
    %283 = vmatpush1.bf16.msra.mxu0 0
    %284 = vmatprep.mubr.bf16.mxu0 0
    %285 = vmatmul.mubr.bf16.gmra.mrb[0].mxu0 %v250
    %v286 = vpop.f32.mrb[0].mxu0
    %v287 = vadd.f32 0.0, %v286
    %v288 = vpop.f32.mrb[0].mxu0
    %v289 = vpop.f32.mrb[0].mxu0
    %v290 = vpop.f32.mrb[0].mxu0
    %291 = vdwg.mxu0
    %v292 = vadd.f32 %v244, %v287
    %v293 = vtanh.pop %v292
    %v294 = vxor.u32 %v292, 2147483648
    %v295 = vmul.f32 %v294, 1.442695
    %v296 = vpow.pop %v295
    %v297 = vadd.f32 %v296, 1.0
    %v298 = vrcp.pop %v297
    %v299 = vmul.f32 1.0, %v298
    %v300 = vsel %vm159, %v293, %v299
    %v301 = vmul.f32 %v300, %v236
    %303 = vrot.lane.b32.xlu0 %v300, 64
    %v304 = vpop.permute.xlu0 %303
    %v306 = vmul.f32 %v300, %v304
    %308 = vrot.lane.b32.xlu0 %v306, 32
    %v309 = vpop.permute.xlu0 %308
    %v311 = vadd.f32 %v301, %v309
    %v312 = vtanh.pop %v311
    %314 = vrot.lane.b32.xlu0 %v312, 64
    %v315 = vpop.permute.xlu0 %314
    %v317 = vmul.f32 %v300, %v315
    %s318 = scalar_lea.vmem [#allocation2], 16
    %v319 = vld [vmem:[%s318] sm:$0xff]
    %v320 = vpack.c.bf16 %v317, %v317
    %322 = vrot.lane.b32.xlu0 %v320, 32
    %v323 = vpop.permute.xlu0 %322
    %v325 = vsel %vm173, %v323, 0
    %327 = vmatprep.subr.bf16.mxu0 0
    %328 = vmatpush1.bf16.msra.mxu0 %v169
    %329 = vmatprep.subr.bf16.mxu0 0
    %330 = vmatpush1.bf16.msra.mxu0 %v170
    %331 = vmatprep.subr.bf16.mxu0 0
    %332 = vmatpush1.bf16.msra.mxu0 0
    %333 = vmatprep.subr.bf16.mxu0 0
    %334 = vmatpush1.bf16.msra.mxu0 0
    %335 = vmatprep.subr.bf16.mxu0 0
    %336 = vmatpush1.bf16.msra.mxu0 0
    %337 = vmatprep.subr.bf16.mxu0 0
    %338 = vmatpush1.bf16.msra.mxu0 0
    %339 = vmatprep.subr.bf16.mxu0 0
    %340 = vmatpush1.bf16.msra.mxu0 0
    %341 = vmatprep.subr.bf16.mxu0 0
    %342 = vmatpush1.bf16.msra.mxu0 0
    %343 = vmatprep.subr.bf16.mxu0 0
    %344 = vmatpush1.bf16.msra.mxu0 0
    %345 = vmatprep.subr.bf16.mxu0 0
    %346 = vmatpush1.bf16.msra.mxu0 0
    %347 = vmatprep.subr.bf16.mxu0 0
    %348 = vmatpush1.bf16.msra.mxu0 0
    %349 = vmatprep.subr.bf16.mxu0 0
    %350 = vmatpush1.bf16.msra.mxu0 0
    %351 = vmatprep.subr.bf16.mxu0 0
    %352 = vmatpush1.bf16.msra.mxu0 0
    %353 = vmatprep.subr.bf16.mxu0 0
    %354 = vmatpush1.bf16.msra.mxu0 0
    %355 = vmatprep.subr.bf16.mxu0 0
    %356 = vmatpush1.bf16.msra.mxu0 0
    %357 = vmatprep.subr.bf16.mxu0 0
    %358 = vmatpush1.bf16.msra.mxu0 0
    %359 = vmatprep.mubr.bf16.mxu0 0
    %360 = vmatmul.mubr.bf16.gmra.mrb[0].mxu0 %v325
    %v361 = vpop.f32.mrb[0].mxu0
    %v362 = vadd.f32 0.0, %v361
    %v363 = vpop.f32.mrb[0].mxu0
    %v364 = vpop.f32.mrb[0].mxu0
    %v365 = vpop.f32.mrb[0].mxu0
    %366 = vdwg.mxu0
    %v367 = vadd.f32 %v319, %v362
    %v368 = vtanh.pop %v367
    %v369 = vxor.u32 %v367, 2147483648
    %v370 = vmul.f32 %v369, 1.442695
    %v371 = vpow.pop %v370
    %v372 = vadd.f32 %v371, 1.0
    %v373 = vrcp.pop %v372
    %v374 = vmul.f32 1.0, %v373
    %v375 = vsel %vm159, %v368, %v374
    %v376 = vmul.f32 %v375, %v311
    %378 = vrot.lane.b32.xlu0 %v375, 64
    %v379 = vpop.permute.xlu0 %378
    %v381 = vmul.f32 %v375, %v379
    %383 = vrot.lane.b32.xlu0 %v381, 32
    %v384 = vpop.permute.xlu0 %383
    %v386 = vadd.f32 %v376, %v384
    %v387 = vtanh.pop %v386
    %389 = vrot.lane.b32.xlu0 %v387, 64
    %v390 = vpop.permute.xlu0 %389
    %v392 = vmul.f32 %v375, %v390
    %s393 = scalar_lea.vmem [#allocation2], 24
    %v394 = vld [vmem:[%s393] sm:$0xff]
    %v395 = vpack.c.bf16 %v392, %v392
    %397 = vrot.lane.b32.xlu0 %v395, 32
    %v398 = vpop.permute.xlu0 %397
    %v400 = vsel %vm173, %v398, 0
    %402 = vmatprep.subr.bf16.mxu0 0
    %403 = vmatpush1.bf16.msra.mxu0 %v169
    %404 = vmatprep.subr.bf16.mxu0 0
    %405 = vmatpush1.bf16.msra.mxu0 %v170
    %406 = vmatprep.subr.bf16.mxu0 0
    %407 = vmatpush1.bf16.msra.mxu0 0
    %408 = vmatprep.subr.bf16.mxu0 0
    %409 = vmatpush1.bf16.msra.mxu0 0
    %410 = vmatprep.subr.bf16.mxu0 0
    %411 = vmatpush1.bf16.msra.mxu0 0
    %412 = vmatprep.subr.bf16.mxu0 0
    %413 = vmatpush1.bf16.msra.mxu0 0
    %414 = vmatprep.subr.bf16.mxu0 0
    %415 = vmatpush1.bf16.msra.mxu0 0
    %416 = vmatprep.subr.bf16.mxu0 0
    %417 = vmatpush1.bf16.msra.mxu0 0
    %418 = vmatprep.subr.bf16.mxu0 0
    %419 = vmatpush1.bf16.msra.mxu0 0
    %420 = vmatprep.subr.bf16.mxu0 0
    %421 = vmatpush1.bf16.msra.mxu0 0
    %422 = vmatprep.subr.bf16.mxu0 0
    %423 = vmatpush1.bf16.msra.mxu0 0
    %424 = vmatprep.subr.bf16.mxu0 0
    %425 = vmatpush1.bf16.msra.mxu0 0
    %426 = vmatprep.subr.bf16.mxu0 0
    %427 = vmatpush1.bf16.msra.mxu0 0
    %428 = vmatprep.subr.bf16.mxu0 0
    %429 = vmatpush1.bf16.msra.mxu0 0
    %430 = vmatprep.subr.bf16.mxu0 0
    %431 = vmatpush1.bf16.msra.mxu0 0
    %432 = vmatprep.subr.bf16.mxu0 0
    %433 = vmatpush1.bf16.msra.mxu0 0
    %434 = vmatprep.mubr.bf16.mxu0 0
    %435 = vmatmul.mubr.bf16.gmra.mrb[0].mxu0 %v400
    %v436 = vpop.f32.mrb[0].mxu0
    %v437 = vadd.f32 0.0, %v436
    %v438 = vpop.f32.mrb[0].mxu0
    %v439 = vpop.f32.mrb[0].mxu0
    %v440 = vpop.f32.mrb[0].mxu0
    %441 = vdwg.mxu0
    %v442 = vadd.f32 %v394, %v437
    %v443 = vtanh.pop %v442
    %v444 = vxor.u32 %v442, 2147483648
    %v445 = vmul.f32 %v444, 1.442695
    %v446 = vpow.pop %v445
    %v447 = vadd.f32 %v446, 1.0
    %v448 = vrcp.pop %v447
    %v449 = vmul.f32 1.0, %v448
    %v450 = vsel %vm159, %v443, %v449
    %v451 = vmul.f32 %v450, %v386
    %453 = vrot.lane.b32.xlu0 %v450, 64
    %v454 = vpop.permute.xlu0 %453
    %v456 = vmul.f32 %v450, %v454
    %458 = vrot.lane.b32.xlu0 %v456, 32
    %v459 = vpop.permute.xlu0 %458
    %v461 = vadd.f32 %v451, %v459
    %v462 = vtanh.pop %v461
    %464 = vrot.lane.b32.xlu0 %v462, 64
    %v465 = vpop.permute.xlu0 %464
    %v467 = vmul.f32 %v450, %v465
    %s468 = scalar_lea.vmem [#allocation2], 32
    %v469 = vld [vmem:[%s468] sm:$0xff]
    %v470 = vpack.c.bf16 %v467, %v467
    %472 = vrot.lane.b32.xlu0 %v470, 32
    %v473 = vpop.permute.xlu0 %472
    %v475 = vsel %vm173, %v473, 0
    %477 = vmatprep.subr.bf16.mxu0 0
    %478 = vmatpush1.bf16.msra.mxu0 %v169
    %479 = vmatprep.subr.bf16.mxu0 0
    %480 = vmatpush1.bf16.msra.mxu0 %v170
    %481 = vmatprep.subr.bf16.mxu0 0
    %482 = vmatpush1.bf16.msra.mxu0 0
    %483 = vmatprep.subr.bf16.mxu0 0
    %484 = vmatpush1.bf16.msra.mxu0 0
    %485 = vmatprep.subr.bf16.mxu0 0
    %486 = vmatpush1.bf16.msra.mxu0 0
    %487 = vmatprep.subr.bf16.mxu0 0
    %488 = vmatpush1.bf16.msra.mxu0 0
    %489 = vmatprep.subr.bf16.mxu0 0
    %490 = vmatpush1.bf16.msra.mxu0 0
    %491 = vmatprep.subr.bf16.mxu0 0
    %492 = vmatpush1.bf16.msra.mxu0 0
    %493 = vmatprep.subr.bf16.mxu0 0
    %494 = vmatpush1.bf16.msra.mxu0 0
    %495 = vmatprep.subr.bf16.mxu0 0
    %496 = vmatpush1.bf16.msra.mxu0 0
    %497 = vmatprep.subr.bf16.mxu0 0
    %498 = vmatpush1.bf16.msra.mxu0 0
    %499 = vmatprep.subr.bf16.mxu0 0
    %500 = vmatpush1.bf16.msra.mxu0 0
    %501 = vmatprep.subr.bf16.mxu0 0
    %502 = vmatpush1.bf16.msra.mxu0 0
    %503 = vmatprep.subr.bf16.mxu0 0
    %504 = vmatpush1.bf16.msra.mxu0 0
    %505 = vmatprep.subr.bf16.mxu0 0
    %506 = vmatpush1.bf16.msra.mxu0 0
    %507 = vmatprep.subr.bf16.mxu0 0
    %508 = vmatpush1.bf16.msra.mxu0 0
    %509 = vmatprep.mubr.bf16.mxu0 0
    %510 = vmatmul.mubr.bf16.gmra.mrb[0].mxu0 %v475
    %v511 = vpop.f32.mrb[0].mxu0
    %v512 = vadd.f32 0.0, %v511
    %v513 = vpop.f32.mrb[0].mxu0
    %v514 = vpop.f32.mrb[0].mxu0
    %v515 = vpop.f32.mrb[0].mxu0
    %516 = vdwg.mxu0
    %v517 = vadd.f32 %v469, %v512
    %v518 = vtanh.pop %v517
    %v519 = vxor.u32 %v517, 2147483648
    %v520 = vmul.f32 %v519, 1.442695
    %v521 = vpow.pop %v520
    %v522 = vadd.f32 %v521, 1.0
    %v523 = vrcp.pop %v522
    %v524 = vmul.f32 1.0, %v523
    %v525 = vsel %vm159, %v518, %v524
    %v526 = vmul.f32 %v525, %v461
    %528 = vrot.lane.b32.xlu0 %v525, 64
    %v529 = vpop.permute.xlu0 %528
    %v531 = vmul.f32 %v525, %v529
    %533 = vrot.lane.b32.xlu0 %v531, 32
    %v534 = vpop.permute.xlu0 %533
    %v536 = vadd.f32 %v526, %v534
    %v537 = vtanh.pop %v536
    %539 = vrot.lane.b32.xlu0 %v537, 64
    %v540 = vpop.permute.xlu0 %539
    %v542 = vmul.f32 %v525, %v540
    %s543 = scalar_lea.vmem [#allocation2], 40
    %v544 = vld [vmem:[%s543] sm:$0xff]
    %v545 = vpack.c.bf16 %v542, %v542
    %547 = vrot.lane.b32.xlu0 %v545, 32
    %v548 = vpop.permute.xlu0 %547
    %v550 = vsel %vm173, %v548, 0
    %552 = vmatprep.subr.bf16.mxu0 0
    %553 = vmatpush1.bf16.msra.mxu0 %v169
    %554 = vmatprep.subr.bf16.mxu0 0
    %555 = vmatpush1.bf16.msra.mxu0 %v170
    %556 = vmatprep.subr.bf16.mxu0 0
    %557 = vmatpush1.bf16.msra.mxu0 0
    %558 = vmatprep.subr.bf16.mxu0 0
    %559 = vmatpush1.bf16.msra.mxu0 0
    %560 = vmatprep.subr.bf16.mxu0 0
    %561 = vmatpush1.bf16.msra.mxu0 0
    %562 = vmatprep.subr.bf16.mxu0 0
    %563 = vmatpush1.bf16.msra.mxu0 0
    %564 = vmatprep.subr.bf16.mxu0 0
    %565 = vmatpush1.bf16.msra.mxu0 0
    %566 = vmatprep.subr.bf16.mxu0 0
    %567 = vmatpush1.bf16.msra.mxu0 0
    %568 = vmatprep.subr.bf16.mxu0 0
    %569 = vmatpush1.bf16.msra.mxu0 0
    %570 = vmatprep.subr.bf16.mxu0 0
    %571 = vmatpush1.bf16.msra.mxu0 0
    %572 = vmatprep.subr.bf16.mxu0 0
    %573 = vmatpush1.bf16.msra.mxu0 0
    %574 = vmatprep.subr.bf16.mxu0 0
    %575 = vmatpush1.bf16.msra.mxu0 0
    %576 = vmatprep.subr.bf16.mxu0 0
    %577 = vmatpush1.bf16.msra.mxu0 0
    %578 = vmatprep.subr.bf16.mxu0 0
    %579 = vmatpush1.bf16.msra.mxu0 0
    %580 = vmatprep.subr.bf16.mxu0 0
    %581 = vmatpush1.bf16.msra.mxu0 0
    %582 = vmatprep.subr.bf16.mxu0 0
    %583 = vmatpush1.bf16.msra.mxu0 0
    %584 = vmatprep.mubr.bf16.mxu0 0
    %585 = vmatmul.mubr.bf16.gmra.mrb[0].mxu0 %v550
    %v586 = vpop.f32.mrb[0].mxu0
    %v587 = vadd.f32 0.0, %v586
    %v588 = vpop.f32.mrb[0].mxu0
    %v589 = vpop.f32.mrb[0].mxu0
    %v590 = vpop.f32.mrb[0].mxu0
    %591 = vdwg.mxu0
    %v592 = vadd.f32 %v544, %v587
    %v593 = vtanh.pop %v592
    %v594 = vxor.u32 %v592, 2147483648
    %v595 = vmul.f32 %v594, 1.442695
    %v596 = vpow.pop %v595
    %v597 = vadd.f32 %v596, 1.0
    %v598 = vrcp.pop %v597
    %v599 = vmul.f32 1.0, %v598
    %v600 = vsel %vm159, %v593, %v599
    %v601 = vmul.f32 %v600, %v536
    %603 = vrot.lane.b32.xlu0 %v600, 64
    %v604 = vpop.permute.xlu0 %603
    %v606 = vmul.f32 %v600, %v604
    %608 = vrot.lane.b32.xlu0 %v606, 32
    %v609 = vpop.permute.xlu0 %608
    %v611 = vadd.f32 %v601, %v609
    %v612 = vtanh.pop %v611
    %614 = vrot.lane.b32.xlu0 %v612, 64
    %v615 = vpop.permute.xlu0 %614
    %v617 = vmul.f32 %v600, %v615
    %s618 = scalar_lea.vmem [#allocation2], 48
    %v619 = vld [vmem:[%s618] sm:$0xff]
    %v620 = vpack.c.bf16 %v617, %v617
    %622 = vrot.lane.b32.xlu0 %v620, 32
    %v623 = vpop.permute.xlu0 %622
    %v625 = vsel %vm173, %v623, 0
    %627 = vmatprep.subr.bf16.mxu0 0
    %628 = vmatpush1.bf16.msra.mxu0 %v169
    %629 = vmatprep.subr.bf16.mxu0 0
    %630 = vmatpush1.bf16.msra.mxu0 %v170
    %631 = vmatprep.subr.bf16.mxu0 0
    %632 = vmatpush1.bf16.msra.mxu0 0
    %633 = vmatprep.subr.bf16.mxu0 0
    %634 = vmatpush1.bf16.msra.mxu0 0
    %635 = vmatprep.subr.bf16.mxu0 0
    %636 = vmatpush1.bf16.msra.mxu0 0
    %637 = vmatprep.subr.bf16.mxu0 0
    %638 = vmatpush1.bf16.msra.mxu0 0
    %639 = vmatprep.subr.bf16.mxu0 0
    %640 = vmatpush1.bf16.msra.mxu0 0
    %641 = vmatprep.subr.bf16.mxu0 0
    %642 = vmatpush1.bf16.msra.mxu0 0
    %643 = vmatprep.subr.bf16.mxu0 0
    %644 = vmatpush1.bf16.msra.mxu0 0
    %645 = vmatprep.subr.bf16.mxu0 0
    %646 = vmatpush1.bf16.msra.mxu0 0
    %647 = vmatprep.subr.bf16.mxu0 0
    %648 = vmatpush1.bf16.msra.mxu0 0
    %649 = vmatprep.subr.bf16.mxu0 0
    %650 = vmatpush1.bf16.msra.mxu0 0
    %651 = vmatprep.subr.bf16.mxu0 0
    %652 = vmatpush1.bf16.msra.mxu0 0
    %653 = vmatprep.subr.bf16.mxu0 0
    %654 = vmatpush1.bf16.msra.mxu0 0
    %655 = vmatprep.subr.bf16.mxu0 0
    %656 = vmatpush1.bf16.msra.mxu0 0
    %657 = vmatprep.subr.bf16.mxu0 0
    %658 = vmatpush1.bf16.msra.mxu0 0
    %659 = vmatprep.mubr.bf16.mxu0 0
    %660 = vmatmul.mubr.bf16.gmra.mrb[0].mxu0 %v625
    %v661 = vpop.f32.mrb[0].mxu0
    %v662 = vadd.f32 0.0, %v661
    %v663 = vpop.f32.mrb[0].mxu0
    %v664 = vpop.f32.mrb[0].mxu0
    %v665 = vpop.f32.mrb[0].mxu0
    %666 = vdwg.mxu0
    %v667 = vadd.f32 %v619, %v662
    %v668 = vtanh.pop %v667
    %v669 = vxor.u32 %v667, 2147483648
    %v670 = vmul.f32 %v669, 1.442695
    %v671 = vpow.pop %v670
    %v672 = vadd.f32 %v671, 1.0
    %v673 = vrcp.pop %v672
    %v674 = vmul.f32 1.0, %v673
    %v675 = vsel %vm159, %v668, %v674
    %v676 = vmul.f32 %v675, %v611
    %678 = vrot.lane.b32.xlu0 %v675, 64
    %v679 = vpop.permute.xlu0 %678
    %v681 = vmul.f32 %v675, %v679
    %683 = vrot.lane.b32.xlu0 %v681, 32
    %v684 = vpop.permute.xlu0 %683
    %v686 = vadd.f32 %v676, %v684
    %v687 = vtanh.pop %v686
    %689 = vrot.lane.b32.xlu0 %v687, 64
    %v690 = vpop.permute.xlu0 %689
    %v692 = vmul.f32 %v675, %v690
    %s693 = scalar_lea.vmem [#allocation2], 56
    %v694 = vld [vmem:[%s693] sm:$0xff]
    %v695 = vpack.c.bf16 %v692, %v692
    %697 = vrot.lane.b32.xlu0 %v695, 32
    %v698 = vpop.permute.xlu0 %697
    %v700 = vsel %vm173, %v698, 0
    %702 = vmatprep.subr.bf16.mxu0 0
    %703 = vmatpush1.bf16.msra.mxu0 %v169
    %704 = vmatprep.subr.bf16.mxu0 0
    %705 = vmatpush1.bf16.msra.mxu0 %v170
    %706 = vmatprep.subr.bf16.mxu0 0
    %707 = vmatpush1.bf16.msra.mxu0 0
    %708 = vmatprep.subr.bf16.mxu0 0
    %709 = vmatpush1.bf16.msra.mxu0 0
    %710 = vmatprep.subr.bf16.mxu0 0
    %711 = vmatpush1.bf16.msra.mxu0 0
    %712 = vmatprep.subr.bf16.mxu0 0
    %713 = vmatpush1.bf16.msra.mxu0 0
    %714 = vmatprep.subr.bf16.mxu0 0
    %715 = vmatpush1.bf16.msra.mxu0 0
    %716 = vmatprep.subr.bf16.mxu0 0
    %717 = vmatpush1.bf16.msra.mxu0 0
    %718 = vmatprep.subr.bf16.mxu0 0
    %719 = vmatpush1.bf16.msra.mxu0 0
    %720 = vmatprep.subr.bf16.mxu0 0
    %721 = vmatpush1.bf16.msra.mxu0 0
    %722 = vmatprep.subr.bf16.mxu0 0
    %723 = vmatpush1.bf16.msra.mxu0 0
    %724 = vmatprep.subr.bf16.mxu0 0
    %725 = vmatpush1.bf16.msra.mxu0 0
    %726 = vmatprep.subr.bf16.mxu0 0
    %727 = vmatpush1.bf16.msra.mxu0 0
    %728 = vmatprep.subr.bf16.mxu0 0
    %729 = vmatpush1.bf16.msra.mxu0 0
    %730 = vmatprep.subr.bf16.mxu0 0
    %731 = vmatpush1.bf16.msra.mxu0 0
    %732 = vmatprep.subr.bf16.mxu0 0
    %733 = vmatpush1.bf16.msra.mxu0 0
    %734 = vmatprep.mubr.bf16.mxu0 0
    %735 = vmatmul.mubr.bf16.gmra.mrb[0].mxu0 %v700
    %v736 = vpop.f32.mrb[0].mxu0
    %v737 = vadd.f32 0.0, %v736
    %v738 = vpop.f32.mrb[0].mxu0
    %v739 = vpop.f32.mrb[0].mxu0
    %v740 = vpop.f32.mrb[0].mxu0
    %741 = vdwg.mxu0
    %v742 = vadd.f32 %v694, %v737
    %v743 = vtanh.pop %v742
    %v744 = vxor.u32 %v742, 2147483648
    %v745 = vmul.f32 %v744, 1.442695
    %v746 = vpow.pop %v745
    %v747 = vadd.f32 %v746, 1.0
    %v748 = vrcp.pop %v747
    %v749 = vmul.f32 1.0, %v748
    %v750 = vsel %vm159, %v743, %v749
    %v751 = vmul.f32 %v750, %v686
    %753 = vrot.lane.b32.xlu0 %v750, 64
    %v754 = vpop.permute.xlu0 %753
    %v756 = vmul.f32 %v750, %v754
    %758 = vrot.lane.b32.xlu0 %v756, 32
    %v759 = vpop.permute.xlu0 %758
    %v761 = vadd.f32 %v751, %v759
    %v762 = vtanh.pop %v761
    %764 = vrot.lane.b32.xlu0 %v762, 64
    %v765 = vpop.permute.xlu0 %764
    %v767 = vmul.f32 %v750, %v765
    %v768 = vpack.c.bf16 %v767, %v767
    %v769 = vld [vmem:[%s4] sm:$0xf]
    %v770 = vld [vmem:[%s4 + $0x4] sm:$0xf]
    %v771 = vld [vmem:[%s4 + $0x8] sm:$0xf]
    %v772 = vld [vmem:[%s4 + $0xc] sm:$0xf]
    %v773 = vld [vmem:[%s5] sm:$0x1]
    %v775 = vlaneseq
    %v776 = vshrl.u32 %v775, 7
    %v777 = vsub.s32 0, %v776
    %v778 = vrot.slane %v773, %v777
    %781 = vrot.lane.b32.xlu0 %v768, 32
    %v782 = vpop.permute.xlu0 %781
    %v787 = vunpack.c.l.b16 %v769
    %v788 = vunpack.c.l.b16 %v770
    %v789 = vunpack.c.l.b16 %v771
    %v790 = vunpack.c.l.b16 %v772
    %v791 = vpack.c.b16 %v788, %v787
    %v792 = vpack.c.b16 %v790, %v789
    %v796 = vsel %vm173, %v782, 0
    %798 = vmatprep.subr.bf16.mxu0 0
    %799 = vmatpush1.bf16.msra.mxu0 %v791
    %800 = vmatprep.subr.bf16.mxu0 0
    %801 = vmatpush1.bf16.msra.mxu0 %v792
    %802 = vmatprep.subr.bf16.mxu0 0
    %803 = vmatpush1.bf16.msra.mxu0 0
    %804 = vmatprep.subr.bf16.mxu0 0
    %805 = vmatpush1.bf16.msra.mxu0 0
    %806 = vmatprep.subr.bf16.mxu0 0
    %807 = vmatpush1.bf16.msra.mxu0 0
    %808 = vmatprep.subr.bf16.mxu0 0
    %809 = vmatpush1.bf16.msra.mxu0 0
    %810 = vmatprep.subr.bf16.mxu0 0
    %811 = vmatpush1.bf16.msra.mxu0 0
    %812 = vmatprep.subr.bf16.mxu0 0
    %813 = vmatpush1.bf16.msra.mxu0 0
    %814 = vmatprep.subr.bf16.mxu0 0
    %815 = vmatpush1.bf16.msra.mxu0 0
    %816 = vmatprep.subr.bf16.mxu0 0
    %817 = vmatpush1.bf16.msra.mxu0 0
    %818 = vmatprep.subr.bf16.mxu0 0
    %819 = vmatpush1.bf16.msra.mxu0 0
    %820 = vmatprep.subr.bf16.mxu0 0
    %821 = vmatpush1.bf16.msra.mxu0 0
    %822 = vmatprep.subr.bf16.mxu0 0
    %823 = vmatpush1.bf16.msra.mxu0 0
    %824 = vmatprep.subr.bf16.mxu0 0
    %825 = vmatpush1.bf16.msra.mxu0 0
    %826 = vmatprep.subr.bf16.mxu0 0
    %827 = vmatpush1.bf16.msra.mxu0 0
    %828 = vmatprep.subr.bf16.mxu0 0
    %829 = vmatpush1.bf16.msra.mxu0 0
    %830 = vmatprep.mubr.bf16.mxu0 0
    %831 = vmatmul.mubr.bf16.gmra.mrb[0].mxu0 %v796
    %v832 = vpop.f32.mrb[0].mxu0
    %v833 = vadd.f32 %v778, %v832
    %v834 = vpop.f32.mrb[0].mxu0
    %v835 = vpop.f32.mrb[0].mxu0
    %v836 = vpop.f32.mrb[0].mxu0
    %837 = vdwg.mxu0
    %vm838 = vcmp.lt.s32.totalorder %v156, 5
    %v839 = vsel %vm838, %v833, -1e+30
    %840 = vmax.xlane.f32.xlu0 %v839
    %v841 = vpop.xlane.xlu0 %840
    %v842 = vsub.f32 %v833, %v841
    %v843 = vmul.f32 %v842, 1.442695
    %v844 = vpow.pop %v843
    %v845 = vsel %vm838, %v844, 0.0
    %846 = vadd.xlane.f32.xlu0 %v845
    %v847 = vpop.xlane.xlu0 %846
    %v848 = vlog2.pop %v847
    %v849 = vmul.f32 %v848, 0.6931472
    %v850 = vadd.f32 %v841, %v849
    %v851 = vsub.f32 %v833, %v850
    %852 = vst [vmem:[#allocation3] sm:$0xff] %v851
    // Predicated region
    $region26: #{tpu_custom_call.1} parent=1 // pred_check
      _
    $region27: #{tpu_custom_call.1} parent=1 // pred_check_branch
      %854 = sbr.rel (0) target = $region29
    $region28: #{tpu_custom_call.1} parent=1 // pred_region
      %s856 = ssub.s32 128, 128
      %857 = vsyncadd [#allocation4], %s856
      %s859 = sshll.u32 [#allocation3], 4
      %s860 = int_to_ptr.vmem [resolvable:$true] %s859
      %862 = dma.vmem_to_hbm [thread:$0]  %s860, 128, %s6, [#allocation4]
    $region29: #{tpu_custom_call.1} parent=1 // pred_fallthru
      _
    // Predicated region
    $region30: #{tpu_custom_call.1} parent=1 // pred_check
      _
    $region31: #{tpu_custom_call.1} parent=1 // pred_check_branch
      %864 = sbr.rel (0) target = $region33
    $region32: #{tpu_custom_call.1} parent=1 // pred_region
      %865 = dma.done [#allocation4], 128
    $region33: #{tpu_custom_call.1} parent=1 // pred_fallthru
      _
    %866 = vsyncpa [#allocation4], 1

</llo_original>
